<compile_context>
chip_gen: v6e
topology: v6e:2x2x1
jax: 0.10.0
libtpu: 0.0.40
codegen_flags: <defaults>
</compile_context>

<pallas_src>
import jax
import jax.numpy as jnp
from jax.experimental import pallas as pl
from jax.experimental.pallas import tpu as pltpu

_EPS = 1e-5
_SLOPE = 0.2


def _round_up(x, m):
    return (x + m - 1) // m * m


# -----------------------------------------------------------------------------
# Tile selection helpers
# -----------------------------------------------------------------------------
def _pick_tk(kp):
    """Largest multiple of 128 that divides kp (kp % 128 == 0), capped at 1024."""
    q = kp // 128
    for cand in range(min(8, q), 0, -1):
        if q % cand == 0:
            return 128 * cand
    return 128


def _pick_tm(hw):
    """M tile (per-sample spatial rows): multiple of 16, <=512, low padding waste."""
    tm = min(512, _round_up(hw, 16))
    while tm > 16 and _round_up(hw, tm) - hw > tm // 2:
        tm //= 2
    return max(tm, 16)


def _gemm_vmem_limit(tm, tk, tn, out_itemsize):
    a = tm * tk * 2                      # bf16 A tile
    b = tk * tn * 2                      # bf16 B tile
    bias = 8 * tn * 4                    # (1, tn) f32 bias (sublane-padded)
    out = tm * tn * out_itemsize
    acc = tm * tn * 4
    need = 2 * (a + b + bias) + 2 * out + acc
    return int(min(64 << 20, max(32 << 20, 2 * need)))


def _norm_vmem_limit(block_bytes):
    return int(min(64 << 20, max(32 << 20, 4 * block_bytes)))


# -----------------------------------------------------------------------------
# Tiled GEMM kernel: (M, K) @ (K, Cout) + bias, optional fused LeakyReLU.
# -----------------------------------------------------------------------------
def _make_gemm_kernel(apply_lrelu):
    def kernel(a_ref, b_ref, bias_ref, o_ref, acc_ref):
        @pl.when(pl.program_id(2) == 0)
        def _():
            acc_ref[...] = jnp.zeros_like(acc_ref)

        acc_ref[...] += jnp.dot(a_ref[...], b_ref[...],
                                preferred_element_type=jnp.float32)

        # Epilogue only on the last K tile (off the K-loop critical path).
        @pl.when(pl.program_id(2) == pl.num_programs(2) - 1)
        def _():
            y = acc_ref[...] + bias_ref[...]        # bias (1, tn) broadcasts
            if apply_lrelu:
                y = jnp.where(y >= 0, y, _SLOPE * y)
            o_ref[...] = y.astype(o_ref.dtype)

    return kernel


def _conv_gemm(a2d, wmat, bias_p, *, tm, apply_lrelu, out_dtype):
    """a2d (Mp, Kp) bf16 @ wmat (Kp, Cp) bf16 + bias_p (1, Cp) f32 -> (Mp, Cp)."""
    mp, kp = a2d.shape
    _, cp = wmat.shape
    tn = 256 if cp % 256 == 0 else 128
    tk = _pick_tk(kp)
    out_itemsize = jnp.dtype(out_dtype).itemsize

    grid = (mp // tm, cp // tn, kp // tk)
    return pl.pallas_call(
        _make_gemm_kernel(apply_lrelu),
        out_shape=jax.ShapeDtypeStruct((mp, cp), out_dtype),
        grid_spec=pltpu.PrefetchScalarGridSpec(
            num_scalar_prefetch=0,
            grid=grid,
            in_specs=[
                pl.BlockSpec((tm, tk), lambda i, j, kk: (i, kk)),
                pl.BlockSpec((tk, tn), lambda i, j, kk: (kk, j)),
                pl.BlockSpec((1, tn), lambda i, j, kk: (0, j)),
            ],
            out_specs=pl.BlockSpec((tm, tn), lambda i, j, kk: (i, j)),
            scratch_shapes=[pltpu.VMEM((tm, tn), jnp.float32)],
        ),
        compiler_params=pltpu.CompilerParams(
            dimension_semantics=("parallel", "parallel", "arbitrary"),
            vmem_limit_bytes=_gemm_vmem_limit(tm, tk, tn, out_itemsize)),
    )(a2d, wmat, bias_p)


# -----------------------------------------------------------------------------
# Norm pass 1: per-(n, c) sum / sum-of-squares over HW, tiled over HW and C.
# Accumulates in f32 into the (resident) output blocks; padded rows masked.
# -----------------------------------------------------------------------------
def _make_stats_kernel(hw_valid, thw, need_mask):
    def kernel(y_ref, s1_ref, s2_ref):
        h = pl.program_id(1)

        @pl.when(h == 0)
        def _():
            s1_ref[...] = jnp.zeros_like(s1_ref)
            s2_ref[...] = jnp.zeros_like(s2_ref)

        y = y_ref[...].astype(jnp.float32)          # (N, thw, tc)
        if need_mask:
            row = h * thw + jax.lax.broadcasted_iota(
                jnp.int32, (1,) + y.shape[1:], 1)    # (1, thw, tc)
            y = jnp.where(row < hw_valid, y, 0.0)
        # Single sweep: both raw moments.
        s1_ref[...] += jnp.sum(y, axis=1, keepdims=True)
        s2_ref[...] += jnp.sum(y * y, axis=1, keepdims=True)

    return kernel


def _instance_stats(y3, hw_valid, thw):
    n, hwp, cp = y3.shape
    tc = 128
    # Keep the (N, thw, 128) bf16 input block (x2 buffers) under ~8 MiB.
    while (n * thw * tc * 2) * 2 > (8 << 20) and thw % 32 == 0:
        thw //= 2
    grid = (cp // tc, hwp // thw)
    block_bytes = n * thw * tc * 2
    return pl.pallas_call(
        _make_stats_kernel(hw_valid, thw, hw_valid != hwp),
        out_shape=(jax.ShapeDtypeStruct((n, 1, cp), jnp.float32),
                   jax.ShapeDtypeStruct((n, 1, cp), jnp.float32)),
        grid_spec=pltpu.PrefetchScalarGridSpec(
            num_scalar_prefetch=0,
            grid=grid,
            in_specs=[pl.BlockSpec((n, thw, tc), lambda j, h: (0, h, j))],
            out_specs=[pl.BlockSpec((n, 1, tc), lambda j, h: (0, 0, j)),
                       pl.BlockSpec((n, 1, tc), lambda j, h: (0, 0, j))],
        ),
        compiler_params=pltpu.CompilerParams(
            dimension_semantics=("parallel", "arbitrary"),
            vmem_limit_bytes=_norm_vmem_limit(block_bytes)),
    )(y3)


# -----------------------------------------------------------------------------
# Norm pass 2: elementwise y * scale + shift -> LeakyReLU (per-(n, c) affine).
# -----------------------------------------------------------------------------
def _norm_apply_kernel(y_ref, scale_ref, shift_ref, o_ref):
    y = y_ref[...].astype(jnp.float32)              # (1, thw, tc)
    o = y * scale_ref[...] + shift_ref[...]         # scale/shift (1, 1, tc)
    o_ref[...] = jnp.where(o >= 0, o, _SLOPE * o)


def _norm_apply(y3, scale, shift, thw):
    n, hwp, cp = y3.shape
    tc = 256 if cp % 256 == 0 else 128
    grid = (n, hwp // thw, cp // tc)
    block_bytes = thw * tc * 4
    return pl.pallas_call(
        _norm_apply_kernel,
        out_shape=jax.ShapeDtypeStruct((n, hwp, cp), jnp.float32),
        grid_spec=pltpu.PrefetchScalarGridSpec(
            num_scalar_prefetch=0,
            grid=grid,
            in_specs=[
                pl.BlockSpec((1, thw, tc), lambda b, i, j: (b, i, j)),
                pl.BlockSpec((1, 1, tc), lambda b, i, j: (b, 0, j)),
                pl.BlockSpec((1, 1, tc), lambda b, i, j: (b, 0, j)),
            ],
            out_specs=pl.BlockSpec((1, thw, tc), lambda b, i, j: (b, i, j)),
        ),
        compiler_params=pltpu.CompilerParams(
            dimension_semantics=("parallel", "parallel", "parallel"),
            vmem_limit_bytes=_norm_vmem_limit(block_bytes)),
    )(y3, scale, shift)


# -----------------------------------------------------------------------------
# im2col (NHWC, bf16, per-sample layout) + ConvBlock forward
# -----------------------------------------------------------------------------
def _im2col_nhwc(x_nhwc, kh, kw, stride, pad):
    """x (N, H, W, C) -> patches (N, Ho*Wo, kh*kw*C), columns ordered (kh, kw, c)."""
    if pad > 0:
        x_nhwc = jnp.pad(x_nhwc, ((0, 0), (pad, pad), (pad, pad), (0, 0)))
    n, hp, wp, c = x_nhwc.shape
    ho = (hp - kh) // stride + 1
    wo = (wp - kw) // stride + 1
    cols = []
    for i in range(kh):
        for j in range(kw):
            cols.append(
                x_nhwc[:, i:i + stride * ho:stride, j:j + stride * wo:stride, :])
    p = jnp.stack(cols, axis=3)                      # (N, Ho, Wo, kh*kw, C)
    return p.reshape(n, ho * wo, kh * kw * c), ho, wo


def conv_block_nhwc(params, x_nhwc, *, stride=2, padding=1, use_bn=True):
    """NHWC in / NHWC out ConvBlock forward (chaining-friendly entry point)."""
    w, b = params["w"], params["b"]
    c_out, c_in, kh, kw = w.shape
    n = x_nhwc.shape[0]

    # Cast once to bf16 (MXU input dtype); im2col / padding operate on bf16.
    patches, ho, wo = _im2col_nhwc(x_nhwc.astype(jnp.bfloat16),
                                   kh, kw, stride, padding)
    hw = ho * wo
    k = kh * kw * c_in

    tm = _pick_tm(hw)
    hwp = _round_up(hw, tm)               # per-sample M padding (masked later)
    kp = _round_up(k, 128)                # K padded to 128 only (no tk waste)
    cp = _round_up(c_out, 128)

    patches = jnp.pad(patches, ((0, 0), (0, hwp - hw), (0, kp - k)))
    a2d = patches.reshape(n * hwp, kp)    # free leading-dim reshape

    wmat = jnp.transpose(w, (2, 3, 1, 0)).reshape(k, c_out).astype(jnp.bfloat16)
    wmat = jnp.pad(wmat, ((0, kp - k), (0, cp - c_out)))
    bias_p = jnp.pad(b.astype(jnp.float32), (0, cp - c_out)).reshape(1, cp)

    # Conv as GEMM. With norms: bf16 intermediate (halves HBM traffic) and the
    # LeakyReLU moves after the norms; without norms: f32 output + fused LeakyReLU.
    out_dtype = jnp.bfloat16 if use_bn else jnp.float32
    y2d = _conv_gemm(a2d, wmat, bias_p, tm=tm,
                     apply_lrelu=not use_bn, out_dtype=out_dtype)
    y3 = y2d.reshape(n, hwp, cp)          # free leading-dim reshape

    if use_bn:
        # Pass 1: per-(n, c) raw moments over HW (padded rows masked, f32 accum).
        s1, s2 = _instance_stats(y3, hw, tm)

        # Tiny (N, C) math: fold BN (train-mode batch stats) into IN exactly.
        # BN is a per-channel affine a_c*y + b_c; inside IN the shift b_c (and
        # hence beta and the batch mean) cancels, leaving a per-(n, c) affine.
        inv_hw = 1.0 / float(hw)
        mean_i = s1 * inv_hw                                     # (N, 1, Cp)
        var_i = jnp.maximum(s2 * inv_hw - mean_i * mean_i, 0.0)
        inv_b = 1.0 / float(n * hw)
        mean_c = jnp.sum(s1, axis=0, keepdims=True) * inv_b      # (1, 1, Cp)
        var_c = jnp.maximum(jnp.sum(s2, axis=0, keepdims=True) * inv_b
                            - mean_c * mean_c, 0.0)
        gamma_p = jnp.pad(params["gamma"].astype(jnp.float32),
                          (0, cp - c_out), constant_values=1.0).reshape(1, 1, cp)
        a_c = gamma_p * jax.lax.rsqrt(var_c + _EPS)              # BN scale
        scale = a_c * jax.lax.rsqrt(a_c * a_c * var_i + _EPS)    # (N, 1, Cp)
        shift = -mean_i * scale

        # Pass 2: elementwise affine + LeakyReLU.
        y3 = _norm_apply(y3, scale, shift, tm)

    # The only slice; XLA fuses it into the caller's layout change.
    return y3[:, :hw, :c_out].reshape(n, ho, wo, c_out)


def conv_block_forward(params, x, *, stride=2, padding=1, use_bn=True):
    """PyTorch-facing NCHW in / NCHW out wrapper."""
    x_nhwc = jnp.transpose(x, (0, 2, 3, 1))
    y = conv_block_nhwc(params, x_nhwc, stride=stride, padding=padding,
                        use_bn=use_bn)
    return jnp.transpose(y, (0, 3, 1, 2))


_conv_block_jit = jax.jit(conv_block_forward,
                          static_argnames=("stride", "padding", "use_bn"))


# -----------------------------------------------------------------------------
# Pure-JAX reference (f32) for tolerance validation.
# -----------------------------------------------------------------------------
def _reference(params, x, *, stride, padding, use_bn):
    w, b = params["w"], params["b"]
    y = jax.lax.conv_general_dilated(
        x, w, window_strides=(stride, stride),
        padding=[(padding, padding), (padding, padding)],
        dimension_numbers=("NCHW", "OIHW", "NCHW"),
        precision=jax.lax.Precision.HIGHEST)
    y = y + b[None, :, None, None]
    if use_bn:
        mean = jnp.mean(y, axis=(0, 2, 3), keepdims=True)
        var = jnp.var(y, axis=(0, 2, 3), keepdims=True)
        y = (y - mean) * jax.lax.rsqrt(var + _EPS)
        y = y * params["gamma"][None, :, None, None] + params["beta"][None, :, None, None]
        mi = jnp.mean(y, axis=(2, 3), keepdims=True)
        vi = jnp.var(y, axis=(2, 3), keepdims=True)
        y = (y - mi) * jax.lax.rsqrt(vi + _EPS)
    return jnp.where(y >= 0, y, _SLOPE * y)


# -----------------------------------------------------------------------------
if __name__ == "__main__":
    key = jax.random.PRNGKey(0)

    def make_case(k, n, c_in, h, w, c_out, ksz):
        kx, kw_, kb, kg, kbe = jax.random.split(k, 5)
        x = jax.random.normal(kx, (n, c_in, h, w), jnp.float32)
        params = {
            "w": jax.random.normal(kw_, (c_out, c_in, ksz, ksz), jnp.float32) * 0.05,
            "b": jax.random.normal(kb, (c_out,), jnp.float32) * 0.01,
            "gamma": 1.0 + 0.1 * jax.random.normal(kg, (c_out,), jnp.float32),
            "beta": 0.05 * jax.random.normal(kbe, (c_out,), jnp.float32),
        }
        return params, x

    k1, k2 = jax.random.split(key)

    # Case 1: default regime (even spatial), BatchNorm + InstanceNorm + LeakyReLU.
    params, x = make_case(k1, 2, 4, 16, 16, 32, 4)
    out = _conv_block_jit(params, x, stride=2, padding=1, use_bn=True)
    jax.block_until_ready(out)
    assert out.shape == (2, 32, 8, 8)
    ref = _reference(params, x, stride=2, padding=1, use_bn=True)
    err = float(jnp.max(jnp.abs(out - ref)))
    assert err < 1e-1, f"use_bn=True mismatch vs reference: {err}"

    # Case 1b: no norms -> LeakyReLU fused into the GEMM epilogue.
    out2 = _conv_block_jit(params, x, stride=2, padding=1, use_bn=False)
    jax.block_until_ready(out2)
    ref2 = _reference(params, x, stride=2, padding=1, use_bn=False)
    err2 = float(jnp.max(jnp.abs(out2 - ref2)))
    assert err2 < 5e-2, f"use_bn=False mismatch vs reference: {err2}"

    # Case 2: odd spatial size -> exercises padded-row masking in the stats kernel.
    params3, x3 = make_case(k2, 2, 3, 11, 11, 32, 4)
    out3 = _conv_block_jit(params3, x3, stride=2, padding=1, use_bn=True)
    jax.block_until_ready(out3)
    assert out3.shape == (2, 32, 5, 5)
    ref3 = _reference(params3, x3, stride=2, padding=1, use_bn=True)
    err3 = float(jnp.max(jnp.abs(out3 - ref3)))
    assert err3 < 1e-1, f"odd-shape mismatch vs reference: {err3}"

    print("KERNEL_OK")
</pallas_src>

<mosaic_0001>
module attributes {stable_mosaic.version = 11 : i64} {
  func.func @kernel(%arg0: i32, %arg1: i32, %arg2: memref<2x64x128xbf16, #tpu.memory_space<vmem>>, %arg3: memref<2x1x128xf32, #tpu.memory_space<vmem>>, %arg4: memref<2x1x128xf32, #tpu.memory_space<vmem>>) attributes {dimension_semantics = [#tpu.dimension_semantics<parallel>, #tpu.dimension_semantics<arbitrary>], iteration_bounds = array<i64: 1, 1>, scalar_prefetch = 0 : i64, scratch_operands = 0 : i64, tpu.core_type = #tpu.core_type<tc>, window_params = [{transform_indices = @transform_0, window_bounds = array<i64: 2, 64, 128>}, {transform_indices = @transform_1, window_bounds = array<i64: 2, 1, 128>}, {transform_indices = @transform_2, window_bounds = array<i64: 2, 1, 128>}]} {
    %c0_i32 = arith.constant 0 : i32
    %0 = arith.cmpi eq, %arg1, %c0_i32 : i32
    %1 = arith.extui %0 : i1 to i32
    %c0_i32_0 = arith.constant 0 : i32
    %2 = arith.cmpi ne, %1, %c0_i32_0 : i32
    scf.if %2 {
      %cst_16 = arith.constant 0.000000e+00 : f32
      %16 = vector.broadcast %cst_16 : f32 to vector<2x1x128xf32>
      %c0_17 = arith.constant 0 : index
      %c0_18 = arith.constant 0 : index
      %c0_19 = arith.constant 0 : index
      %17 = vector.load %arg3[%c0_17, %c0_18, %c0_19] : memref<2x1x128xf32, #tpu.memory_space<vmem>>, vector<2x1x128xf32>
      tpu.vector_store %arg3[%c0_17, %c0_18, %c0_19], %16 {strides = array<i32>} : memref<2x1x128xf32, #tpu.memory_space<vmem>>, vector<2x1x128xf32>,
      %cst_20 = arith.constant 0.000000e+00 : f32
      %18 = vector.broadcast %cst_20 : f32 to vector<2x1x128xf32>
      %c0_21 = arith.constant 0 : index
      %c0_22 = arith.constant 0 : index
      %c0_23 = arith.constant 0 : index
      %19 = vector.load %arg4[%c0_21, %c0_22, %c0_23] : memref<2x1x128xf32, #tpu.memory_space<vmem>>, vector<2x1x128xf32>
      tpu.vector_store %arg4[%c0_21, %c0_22, %c0_23], %18 {strides = array<i32>} : memref<2x1x128xf32, #tpu.memory_space<vmem>>, vector<2x1x128xf32>,
    } else {
    }
    %c0 = arith.constant 0 : index
    %c0_1 = arith.constant 0 : index
    %c0_2 = arith.constant 0 : index
    %3 = vector.load %arg2[%c0, %c0_1, %c0_2] : memref<2x64x128xbf16, #tpu.memory_space<vmem>>, vector<2x64x128xbf16>
    %4 = arith.extf %3 : vector<2x64x128xbf16> to vector<2x64x128xf32>
    %c0_3 = arith.constant 0 : index
    %c0_4 = arith.constant 0 : index
    %c0_5 = arith.constant 0 : index
    %5 = vector.load %arg3[%c0_3, %c0_4, %c0_5] : memref<2x1x128xf32, #tpu.memory_space<vmem>>, vector<2x1x128xf32>
    %cst = arith.constant dense<0.000000e+00> : vector<2x128xf32>
    %6 = vector.multi_reduction <add>, %4, %cst [1] : vector<2x64x128xf32> to vector<2x128xf32>
    %7 = vector.shape_cast %6 : vector<2x128xf32> to vector<2x1x128xf32>
    %8 = arith.addf %5, %7 : vector<2x1x128xf32>
    %c0_6 = arith.constant 0 : index
    %c0_7 = arith.constant 0 : index
    %c0_8 = arith.constant 0 : index
    %9 = vector.load %arg3[%c0_6, %c0_7, %c0_8] : memref<2x1x128xf32, #tpu.memory_space<vmem>>, vector<2x1x128xf32>
    tpu.vector_store %arg3[%c0_6, %c0_7, %c0_8], %8 {strides = array<i32>} : memref<2x1x128xf32, #tpu.memory_space<vmem>>, vector<2x1x128xf32>,
    %c0_9 = arith.constant 0 : index
    %c0_10 = arith.constant 0 : index
    %c0_11 = arith.constant 0 : index
    %10 = vector.load %arg4[%c0_9, %c0_10, %c0_11] : memref<2x1x128xf32, #tpu.memory_space<vmem>>, vector<2x1x128xf32>
    %11 = arith.mulf %4, %4 : vector<2x64x128xf32>
    %cst_12 = arith.constant dense<0.000000e+00> : vector<2x128xf32>
    %12 = vector.multi_reduction <add>, %11, %cst_12 [1] : vector<2x64x128xf32> to vector<2x128xf32>
    %13 = vector.shape_cast %12 : vector<2x128xf32> to vector<2x1x128xf32>
    %14 = arith.addf %10, %13 : vector<2x1x128xf32>
    %c0_13 = arith.constant 0 : index
    %c0_14 = arith.constant 0 : index
    %c0_15 = arith.constant 0 : index
    %15 = vector.load %arg4[%c0_13, %c0_14, %c0_15] : memref<2x1x128xf32, #tpu.memory_space<vmem>>, vector<2x1x128xf32>
    tpu.vector_store %arg4[%c0_13, %c0_14, %c0_15], %14 {strides = array<i32>} : memref<2x1x128xf32, #tpu.memory_space<vmem>>, vector<2x1x128xf32>,
    return
  }
  func.func @transform_0(%arg0: i32, %arg1: i32) -> (i32, i32, i32) {
    %c0_i32 = arith.constant 0 : i32
    %c0_i32_0 = arith.constant 0 : i32
    return %c0_i32, %arg1, %arg0 : i32, i32, i32
  }
  func.func @transform_1(%arg0: i32, %arg1: i32) -> (i32, i32, i32) {
    %c0_i32 = arith.constant 0 : i32
    %c0_i32_0 = arith.constant 0 : i32
    %c0_i32_1 = arith.constant 0 : i32
    return %c0_i32, %c0_i32_0, %arg0 : i32, i32, i32
  }
  func.func @transform_2(%arg0: i32, %arg1: i32) -> (i32, i32, i32) {
    %c0_i32 = arith.constant 0 : i32
    %c0_i32_0 = arith.constant 0 : i32
    %c0_i32_1 = arith.constant 0 : i32
    return %c0_i32, %c0_i32_0, %arg0 : i32, i32, i32
  }
}

module attributes {stable_mosaic.version = 11 : i64} {
  func.func @kernel(%arg0: i32, %arg1: i32, %arg2: i32, %arg3: memref<64x128xbf16, #tpu.memory_space<vmem>>, %arg4: memref<128x128xbf16, #tpu.memory_space<vmem>>, %arg5: memref<1x128xf32, #tpu.memory_space<vmem>>, %arg6: memref<64x128xbf16, #tpu.memory_space<vmem>>, %arg7: memref<64x128xf32, #tpu.memory_space<vmem>>) attributes {dimension_semantics = [#tpu.dimension_semantics<parallel>, #tpu.dimension_semantics<parallel>, #tpu.dimension_semantics<arbitrary>], iteration_bounds = array<i64: 2, 1, 1>, scalar_prefetch = 0 : i64, scratch_operands = 1 : i64, tpu.core_type = #tpu.core_type<tc>, window_params = [{transform_indices = @transform_0, window_bounds = array<i64: 64, 128>}, {transform_indices = @transform_1, window_bounds = array<i64: 128, 128>}, {transform_indices = @transform_2, window_bounds = array<i64: 1, 128>}, {transform_indices = @transform_3, window_bounds = array<i64: 64, 128>}]} {
    %c0_i32 = arith.constant 0 : i32
    %0 = arith.cmpi eq, %arg2, %c0_i32 : i32
    %1 = arith.extui %0 : i1 to i32
    %c0_i32_0 = arith.constant 0 : i32
    %2 = arith.cmpi ne, %1, %c0_i32_0 : i32
    scf.if %2 {
      %cst_10 = arith.constant 0.000000e+00 : f32
      %12 = vector.broadcast %cst_10 : f32 to vector<64x128xf32>
      %c0_11 = arith.constant 0 : index
      %c0_12 = arith.constant 0 : index
      %13 = vector.load %arg7[%c0_11, %c0_12] : memref<64x128xf32, #tpu.memory_space<vmem>>, vector<64x128xf32>
      tpu.vector_store %arg7[%c0_11, %c0_12], %12 {strides = array<i32>} : memref<64x128xf32, #tpu.memory_space<vmem>>, vector<64x128xf32>,
    } else {
    }
    %c0 = arith.constant 0 : index
    %c0_1 = arith.constant 0 : index
    %3 = vector.load %arg7[%c0, %c0_1] : memref<64x128xf32, #tpu.memory_space<vmem>>, vector<64x128xf32>
    %c0_2 = arith.constant 0 : index
    %c0_3 = arith.constant 0 : index
    %4 = vector.load %arg3[%c0_2, %c0_3] : memref<64x128xbf16, #tpu.memory_space<vmem>>, vector<64x128xbf16>
    %c0_4 = arith.constant 0 : index
    %c0_5 = arith.constant 0 : index
    %5 = vector.load %arg4[%c0_4, %c0_5] : memref<128x128xbf16, #tpu.memory_space<vmem>>, vector<128x128xbf16>
    %cst = arith.constant dense<0.000000e+00> : vector<64x128xf32>
    %6 = tpu.matmul %4, %5, %cst {dimension_numbers = #tpu.dot_dimension_numbers<[1], [0], [0], [1], [0, 0, 1, 1], [], []>} : vector<64x128xbf16>, vector<128x128xbf16>, vector<64x128xf32> -> vector<64x128xf32>
    %7 = arith.addf %3, %6 : vector<64x128xf32>
    %c0_6 = arith.constant 0 : index
    %c0_7 = arith.constant 0 : index
    %8 = vector.load %arg7[%c0_6, %c0_7] : memref<64x128xf32, #tpu.memory_space<vmem>>, vector<64x128xf32>
    tpu.vector_store %arg7[%c0_6, %c0_7], %7 {strides = array<i32>} : memref<64x128xf32, #tpu.memory_space<vmem>>, vector<64x128xf32>,
    %c0_i32_8 = arith.constant 0 : i32
    %9 = arith.cmpi eq, %arg2, %c0_i32_8 : i32
    %10 = arith.extui %9 : i1 to i32
    %c0_i32_9 = arith.constant 0 : i32
    %11 = arith.cmpi ne, %10, %c0_i32_9 : i32
    scf.if %11 {
      %c0_10 = arith.constant 0 : index
      %c0_11 = arith.constant 0 : index
      %12 = vector.load %arg7[%c0_10, %c0_11] : memref<64x128xf32, #tpu.memory_space<vmem>>, vector<64x128xf32>
      %c0_12 = arith.constant 0 : index
      %c0_13 = arith.constant 0 : index
      %13 = vector.load %arg5[%c0_12, %c0_13] : memref<1x128xf32, #tpu.memory_space<vmem>>, vector<1x128xf32>
      %14 = vector.broadcast %13 : vector<1x128xf32> to vector<64x128xf32>
      %15 = arith.addf %12, %14 : vector<64x128xf32>
      %16 = arith.truncf %15 : vector<64x128xf32> to vector<64x128xbf16>
      %c0_14 = arith.constant 0 : index
      %c0_15 = arith.constant 0 : index
      %17 = vector.load %arg6[%c0_14, %c0_15] : memref<64x128xbf16, #tpu.memory_space<vmem>>, vector<64x128xbf16>
      tpu.vector_store %arg6[%c0_14, %c0_15], %16 {strides = array<i32>} : memref<64x128xbf16, #tpu.memory_space<vmem>>, vector<64x128xbf16>,
    } else {
    }
    return
  }
  func.func @transform_0(%arg0: i32, %arg1: i32, %arg2: i32) -> (i32, i32) {
    %c0_i32 = arith.constant 0 : i32
    return %arg0, %arg2 : i32, i32
  }
  func.func @transform_1(%arg0: i32, %arg1: i32, %arg2: i32) -> (i32, i32) {
    %c0_i32 = arith.constant 0 : i32
    return %arg2, %arg1 : i32, i32
  }
  func.func @transform_2(%arg0: i32, %arg1: i32, %arg2: i32) -> (i32, i32) {
    %c0_i32 = arith.constant 0 : i32
    %c0_i32_0 = arith.constant 0 : i32
    return %c0_i32, %arg1 : i32, i32
  }
  func.func @transform_3(%arg0: i32, %arg1: i32, %arg2: i32) -> (i32, i32) {
    %c0_i32 = arith.constant 0 : i32
    return %arg0, %arg1 : i32, i32
  }
}

module attributes {stable_mosaic.version = 11 : i64} {
  func.func @_norm_apply_kernel(%arg0: i32, %arg1: i32, %arg2: i32, %arg3: memref<1x64x128xbf16, #tpu.memory_space<vmem>>, %arg4: memref<1x1x128xf32, #tpu.memory_space<vmem>>, %arg5: memref<1x1x128xf32, #tpu.memory_space<vmem>>, %arg6: memref<1x64x128xf32, #tpu.memory_space<vmem>>) attributes {dimension_semantics = [#tpu.dimension_semantics<parallel>, #tpu.dimension_semantics<parallel>, #tpu.dimension_semantics<parallel>], iteration_bounds = array<i64: 2, 1, 1>, scalar_prefetch = 0 : i64, scratch_operands = 0 : i64, tpu.core_type = #tpu.core_type<tc>, window_params = [{transform_indices = @transform_0, window_bounds = array<i64: 1, 64, 128>}, {transform_indices = @transform_1, window_bounds = array<i64: 1, 1, 128>}, {transform_indices = @transform_2, window_bounds = array<i64: 1, 1, 128>}, {transform_indices = @transform_3, window_bounds = array<i64: 1, 64, 128>}]} {
    %c0 = arith.constant 0 : index
    %c0_0 = arith.constant 0 : index
    %c0_1 = arith.constant 0 : index
    %0 = vector.load %arg3[%c0, %c0_0, %c0_1] : memref<1x64x128xbf16, #tpu.memory_space<vmem>>, vector<1x64x128xbf16>
    %1 = arith.extf %0 : vector<1x64x128xbf16> to vector<1x64x128xf32>
    %c0_2 = arith.constant 0 : index
    %c0_3 = arith.constant 0 : index
    %c0_4 = arith.constant 0 : index
    %2 = vector.load %arg4[%c0_2, %c0_3, %c0_4] : memref<1x1x128xf32, #tpu.memory_space<vmem>>, vector<1x1x128xf32>
    %3 = vector.broadcast %2 : vector<1x1x128xf32> to vector<1x64x128xf32>
    %4 = arith.mulf %1, %3 : vector<1x64x128xf32>
    %c0_5 = arith.constant 0 : index
    %c0_6 = arith.constant 0 : index
    %c0_7 = arith.constant 0 : index
    %5 = vector.load %arg5[%c0_5, %c0_6, %c0_7] : memref<1x1x128xf32, #tpu.memory_space<vmem>>, vector<1x1x128xf32>
    %6 = vector.broadcast %5 : vector<1x1x128xf32> to vector<1x64x128xf32>
    %7 = arith.addf %4, %6 : vector<1x64x128xf32>
    %cst = arith.constant 0.000000e+00 : f32
    %8 = vector.broadcast %cst : f32 to vector<1x64x128xf32>
    %9 = arith.cmpf oge, %7, %8 : vector<1x64x128xf32>
    %cst_8 = arith.constant 2.000000e-01 : f32
    %10 = vector.broadcast %cst_8 : f32 to vector<1x64x128xf32>
    %11 = arith.mulf %10, %7 : vector<1x64x128xf32>
    %12 = arith.select %9, %7, %11 : vector<1x64x128xi1>, vector<1x64x128xf32>
    %c0_9 = arith.constant 0 : index
    %c0_10 = arith.constant 0 : index
    %c0_11 = arith.constant 0 : index
    %13 = vector.load %arg6[%c0_9, %c0_10, %c0_11] : memref<1x64x128xf32, #tpu.memory_space<vmem>>, vector<1x64x128xf32>
    tpu.vector_store %arg6[%c0_9, %c0_10, %c0_11], %12 {strides = array<i32>} : memref<1x64x128xf32, #tpu.memory_space<vmem>>, vector<1x64x128xf32>,
    return
  }
  func.func @transform_0(%arg0: i32, %arg1: i32, %arg2: i32) -> (i32, i32, i32) {
    %c0_i32 = arith.constant 0 : i32
    return %arg0, %arg1, %arg2 : i32, i32, i32
  }
  func.func @transform_1(%arg0: i32, %arg1: i32, %arg2: i32) -> (i32, i32, i32) {
    %c0_i32 = arith.constant 0 : i32
    %c0_i32_0 = arith.constant 0 : i32
    return %arg0, %c0_i32, %arg2 : i32, i32, i32
  }
  func.func @transform_2(%arg0: i32, %arg1: i32, %arg2: i32) -> (i32, i32, i32) {
    %c0_i32 = arith.constant 0 : i32
    %c0_i32_0 = arith.constant 0 : i32
    return %arg0, %c0_i32, %arg2 : i32, i32, i32
  }
  func.func @transform_3(%arg0: i32, %arg1: i32, %arg2: i32) -> (i32, i32, i32) {
    %c0_i32 = arith.constant 0 : i32
    return %arg0, %arg1, %arg2 : i32, i32, i32
  }
}

</mosaic_0001>

<llo_original>
// kernel: conv_block_forward.5
$region0: #{conv_block_forward.5}
  #allocation0 [shape = 'u32[]', space=smem, size = 0x4, offset = 0x4, fixed_abs, tag = 'smem constant byte address 0x4 - core index']
  #allocation1 [shape = 'u32[144,128]{1,0:T(1,128)}', space=vmem, size = 0x12000, scoped, tag = 'internal scratch']
  %s0 = inlined_call_operand.vmem [shape: bf16[2,64,128], index: 0, kind: input, shape index: {}]
  %s1 = inlined_call_operand.vmem [shape: f32[2,1,128], index: 1, kind: input, shape index: {}]
  %s2 = inlined_call_operand.vmem [shape: f32[2,1,128], index: 2, kind: input, shape index: {}]
  %s3 = inlined_call_operand.vmem [shape: f32[2,64,128], index: 3, kind: output, shape index: {}]
  %s4 = sld [smem:[#allocation0]]
  $region45: #{conv_block_forward.5} parent=0
    _
  %s6 = ssub.s32 1, %s4
  %s7 = scalar_select 0, %s6, %s4
  loop: start=0, step=1, limit=4
  $region2: #{conv_block_forward.5} parent=0 // loop_pre_header
    _
  $region3: #{conv_block_forward.5} parent=0 // loop_header
    %s9 = sphi 0, %s13
    %p10 = scmp.ge.s32.totalorder %s9, 4
    %s16 = sphi 0, %s35
    %s17 = sphi 0, %s31
    %s18 = sphi 0, %s27
    %s19 = sphi 0, %s16
    %s20 = sphi 0, %s17
    %s21 = sphi 0, %s18
    %s22 = sphi 0, %s19
    %s23 = sphi 0, %s20
    %s24 = sphi 0, %s21
    %s42 = sphi 0, %s44
    %s45 = sphi 0, %s42
    %s46 = sphi 0, %s45
    %s62 = sphi 0, %s46
    %s70 = sphi 0, %s72
    %s73 = sphi 0, %s70
    %s74 = sphi 0, %s73
    %s90 = sphi 0, %s74
    %s98 = sphi 0, %s100
    %s101 = sphi 0, %s98
    %s102 = sphi 0, %s101
    %s118 = sphi 0, %s102
    %s128 = sphi 0, %s130
    %s131 = sphi 0, %s128
    %s132 = sphi 0, %s131
    %s148 = sphi 0, %s132
  $region4: #{conv_block_forward.5} parent=0 // loop_header_branch
    %12 = sbr.rel (%p10) target = $region8
  $region5: #{conv_block_forward.5} parent=0 // loop_body
    %s14 = ssub.s32 %s9, 1
    %s15 = ssub.s32 %s9, 2
    %s25 = sadd.s32 1, %s18
    %p26 = scmp.ge.s32.totalorder %s25, 1
    %s27 = scalar_select %p26, 0, %s25
    %s28 = sadd.s32 1, %s17
    %s29 = scalar_select %p26, %s28, %s17
    %p30 = scmp.ge.s32.totalorder %s29, 1
    %s31 = scalar_select %p30, 0, %s29
    %s32 = sadd.s32 1, %s16
    %s33 = scalar_select %p30, %s32, %s16
    %p34 = scmp.ge.s32.totalorder %s33, 2
    %s35 = scalar_select %p34, 0, %s33
    %s36 = ssub.s32 %s16, %s35
    %s37 = ssub.s32 %s17, %s31
    %s38 = sor.u32 %s36, %s37
    %s39 = ssub.s32 %s18, %s27
    %s40 = sor.u32 %s38, %s39
    %p41 = scmp.eq.s32.totalorder %s40, 0
    %s43 = sadd.s32 %s42, 1
    %s44 = scalar_select %p41, %s42, %s43
    %p47 = pneg %p41
    %p48 = scmp.eq.s32.totalorder %s9, 1
    %p49 = por %p47, %p48
    %p50 = scmp.ne.s32.totalorder %s42, %s45
    %p51 = scmp.eq.s32.totalorder %s9, 0
    %p52 = por %p50, %p51
    %p53 = scmp.ne.s32.totalorder %s42, %s45
    %p54 = scmp.eq.s32.totalorder %s14, 1
    %p55 = por %p53, %p54
    %p56 = scmp.ne.s32.totalorder %s45, %s46
    %p57 = scmp.eq.s32.totalorder %s14, 0
    %p58 = por %p56, %p57
    %p59 = scmp.ne.s32.totalorder %s45, %s46
    %p60 = scmp.eq.s32.totalorder %s15, 1
    %p61 = por %p59, %p60
    %p63 = scmp.ne.s32.totalorder %s46, %s62
    %p64 = scmp.eq.s32.totalorder %s15, 0
    %p65 = por %p63, %p64
    %s66 = ssub.s32 %s16, %s35
    %s67 = ssub.s32 %s18, %s27
    %s68 = sor.u32 %s66, %s67
    %p69 = scmp.eq.s32.totalorder %s68, 0
    %s71 = sadd.s32 %s70, 1
    %s72 = scalar_select %p69, %s70, %s71
    %p75 = pneg %p69
    %p76 = scmp.eq.s32.totalorder %s9, 1
    %p77 = por %p75, %p76
    %p78 = scmp.ne.s32.totalorder %s70, %s73
    %p79 = scmp.eq.s32.totalorder %s9, 0
    %p80 = por %p78, %p79
    %p81 = scmp.ne.s32.totalorder %s70, %s73
    %p82 = scmp.eq.s32.totalorder %s14, 1
    %p83 = por %p81, %p82
    %p84 = scmp.ne.s32.totalorder %s73, %s74
    %p85 = scmp.eq.s32.totalorder %s14, 0
    %p86 = por %p84, %p85
    %p87 = scmp.ne.s32.totalorder %s73, %s74
    %p88 = scmp.eq.s32.totalorder %s15, 1
    %p89 = por %p87, %p88
    %p91 = scmp.ne.s32.totalorder %s74, %s90
    %p92 = scmp.eq.s32.totalorder %s15, 0
    %p93 = por %p91, %p92
    %s94 = ssub.s32 %s16, %s35
    %s95 = ssub.s32 %s18, %s27
    %s96 = sor.u32 %s94, %s95
    %p97 = scmp.eq.s32.totalorder %s96, 0
    %s99 = sadd.s32 %s98, 1
    %s100 = scalar_select %p97, %s98, %s99
    %p103 = pneg %p97
    %p104 = scmp.eq.s32.totalorder %s9, 1
    %p105 = por %p103, %p104
    %p106 = scmp.ne.s32.totalorder %s98, %s101
    %p107 = scmp.eq.s32.totalorder %s9, 0
    %p108 = por %p106, %p107
    %p109 = scmp.ne.s32.totalorder %s98, %s101
    %p110 = scmp.eq.s32.totalorder %s14, 1
    %p111 = por %p109, %p110
    %p112 = scmp.ne.s32.totalorder %s101, %s102
    %p113 = scmp.eq.s32.totalorder %s14, 0
    %p114 = por %p112, %p113
    %p115 = scmp.ne.s32.totalorder %s101, %s102
    %p116 = scmp.eq.s32.totalorder %s15, 1
    %p117 = por %p115, %p116
    %p119 = scmp.ne.s32.totalorder %s102, %s118
    %p120 = scmp.eq.s32.totalorder %s15, 0
    %p121 = por %p119, %p120
    %s122 = ssub.s32 %s16, %s35
    %s123 = ssub.s32 %s17, %s31
    %s124 = sor.u32 %s122, %s123
    %s125 = ssub.s32 %s18, %s27
    %s126 = sor.u32 %s124, %s125
    %p127 = scmp.eq.s32.totalorder %s126, 0
    %s129 = sadd.s32 %s128, 1
    %s130 = scalar_select %p127, %s128, %s129
    %p133 = pneg %p127
    %p134 = scmp.eq.s32.totalorder %s9, 1
    %p135 = por %p133, %p134
    %p136 = scmp.ne.s32.totalorder %s128, %s131
    %p137 = scmp.eq.s32.totalorder %s9, 0
    %p138 = por %p136, %p137
    %p139 = scmp.ne.s32.totalorder %s128, %s131
    %p140 = scmp.eq.s32.totalorder %s14, 1
    %p141 = por %p139, %p140
    %p142 = scmp.ne.s32.totalorder %s131, %s132
    %p143 = scmp.eq.s32.totalorder %s14, 0
    %p144 = por %p142, %p143
    %p145 = scmp.ne.s32.totalorder %s131, %s132
    %p146 = scmp.eq.s32.totalorder %s15, 1
    %p147 = por %p145, %p146
    %p149 = scmp.ne.s32.totalorder %s132, %s148
    %p150 = scmp.eq.s32.totalorder %s15, 0
    %p151 = por %p149, %p150
    %p152 = scmp.le.s32.totalorder 1, %s9
    %p153 = scmp.lt.s32.totalorder %s9, 3
    %p154 = pnand %p152, %p153
    %p155 = pneg %p154
    // Predicated region
    $region9: #{conv_block_forward.5} parent=5 // pred_check
      _
    $region10: #{conv_block_forward.5} parent=5 // pred_check_branch
      %157 = sbr.rel (%p154) target = $region12
    $region11: #{conv_block_forward.5} parent=5 // pred_region
      %s158 = ssub.s32 %s9, 1
    $region12: #{conv_block_forward.5} parent=5 // pred_fallthru
      _
    %p159 = scmp.lt.s32.totalorder %s9, 2
    // Predicated region
    $region13: #{conv_block_forward.5} parent=5 // pred_check
      %p160 = pneg %p159
    $region14: #{conv_block_forward.5} parent=5 // pred_check_branch
      %162 = sbr.rel (%p160) target = $region16
    $region15: #{conv_block_forward.5} parent=5 // pred_region
      // Predicated region
      $region17: #{conv_block_forward.5} parent=15 // pred_check
        %p163 = pneg %p52
      $region18: #{conv_block_forward.5} parent=15 // pred_check_branch
        %165 = sbr.rel (%p163) target = $region20
      $region19: #{conv_block_forward.5} parent=15 // pred_region
        %s166 = smul.u32 8, %s17
        %p167 = scmp.lt.s32.totalorder %s16, 1
        %s168 = scalar_select %p167, %s16, 1
        %p169 = scmp.lt.s32.totalorder %s166, 7
        %s170 = scalar_select %p169, %s166, 7
        %p171 = scmp.lt.s32.totalorder %s18, 0
        %s172 = scalar_select %p171, %s18, 0
        %s173 = sadd.s32 %s172, %s170
        %s174 = smul.addr %s168, 8
        %s175 = sadd.s32 %s173, %s174
        %s176 = smul.addr %s175, 4
        %s177 = scalar_lea.vmem %s0, %s176
        %s178 = smul.u32 8, %s17
      $region20: #{conv_block_forward.5} parent=15 // pred_fallthru
        _
      // Predicated region
      $region21: #{conv_block_forward.5} parent=15 // pred_check
        %p179 = pneg %p80
      $region22: #{conv_block_forward.5} parent=15 // pred_check_branch
        %181 = sbr.rel (%p179) target = $region24
      $region23: #{conv_block_forward.5} parent=15 // pred_region
        %p182 = scmp.lt.s32.totalorder %s16, 1
        %s183 = scalar_select %p182, %s16, 1
        %p184 = scmp.lt.s32.totalorder %s18, 0
        %s185 = scalar_select %p184, %s18, 0
        %s186 = sadd.s32 %s185, %s183
        %s187 = scalar_lea.vmem %s1, %s186
      $region24: #{conv_block_forward.5} parent=15 // pred_fallthru
        _
      // Predicated region
      $region25: #{conv_block_forward.5} parent=15 // pred_check
        %p188 = pneg %p108
      $region26: #{conv_block_forward.5} parent=15 // pred_check_branch
        %190 = sbr.rel (%p188) target = $region28
      $region27: #{conv_block_forward.5} parent=15 // pred_region
        %p191 = scmp.lt.s32.totalorder %s16, 1
        %s192 = scalar_select %p191, %s16, 1
        %p193 = scmp.lt.s32.totalorder %s18, 0
        %s194 = scalar_select %p193, %s18, 0
        %s195 = sadd.s32 %s194, %s192
        %s196 = scalar_lea.vmem %s2, %s195
      $region28: #{conv_block_forward.5} parent=15 // pred_fallthru
        _
    $region16: #{conv_block_forward.5} parent=5 // pred_fallthru
      _
    %p197 = scmp.le.s32.totalorder 1, %s9
    %p198 = scmp.lt.s32.totalorder %s9, 3
    %p199 = pnand %p197, %p198
    %p200 = pneg %p199
    // Predicated region
    $region29: #{conv_block_forward.5} parent=5 // pred_check
      _
    $region30: #{conv_block_forward.5} parent=5 // pred_check_branch
      %202 = sbr.rel (%p199) target = $region32
    $region31: #{conv_block_forward.5} parent=5 // pred_region
      %s203 = ssub.s32 %s9, 1
      %s204 = smul.u32 8, %s20
      %p205 = scmp.lt.s32.totalorder %s19, 1
      %s206 = scalar_select %p205, %s19, 1
      %p207 = scmp.lt.s32.totalorder %s204, 7
      %s208 = scalar_select %p207, %s204, 7
      %p209 = scmp.lt.s32.totalorder %s21, 0
      %s210 = scalar_select %p209, %s21, 0
      %s211 = sadd.s32 %s210, %s208
      %s212 = smul.addr %s206, 8
      %s213 = sadd.s32 %s211, %s212
      %s214 = smul.addr %s213, 4
      %s215 = scalar_lea.vmem %s0, %s214
      %p216 = pneg %p58
      %p217 = pneg %p55
      %p218 = scmp.lt.s32.totalorder %s19, 1
      %s219 = scalar_select %p218, %s19, 1
      %p220 = scmp.lt.s32.totalorder %s21, 0
      %s221 = scalar_select %p220, %s21, 0
      %s222 = sadd.s32 %s221, %s219
      %s223 = scalar_lea.vmem %s1, %s222
      %p224 = pneg %p86
      %p225 = pneg %p83
      %p226 = scmp.lt.s32.totalorder %s19, 1
      %s227 = scalar_select %p226, %s19, 1
      %p228 = scmp.lt.s32.totalorder %s21, 0
      %s229 = scalar_select %p228, %s21, 0
      %s230 = sadd.s32 %s229, %s227
      %s231 = scalar_lea.vmem %s2, %s230
      %p232 = pneg %p114
      %p233 = pneg %p111
      %p234 = pneg %p144
      %p235 = pneg %p141
      %s236 = smul.u32 8, %s20
      %p237 = scmp.lt.s32.totalorder %s19, 1
      %s238 = scalar_select %p237, %s19, 1
      %p239 = scmp.lt.s32.totalorder %s236, 7
      %s240 = scalar_select %p239, %s236, 7
      %p241 = scmp.lt.s32.totalorder %s21, 0
      %s242 = scalar_select %p241, %s21, 0
      %s243 = sadd.s32 %s242, %s240
      %s244 = smul.addr %s238, 8
      %s245 = sadd.s32 %s243, %s244
      %s246 = smul.addr %s245, 8
      %s247 = scalar_lea.vmem %s3, %s246
      %s248 = smul.u32 8, %s20
      %p249 = scmp.lt.s32.totalorder %s19, 1
      %s250 = scalar_select %p249, %s19, 1
      %p251 = scmp.lt.s32.totalorder %s248, 7
      %s252 = scalar_select %p251, %s248, 7
      %p253 = scmp.lt.s32.totalorder %s21, 0
      %s254 = scalar_select %p253, %s21, 0
      %s255 = sadd.s32 %s254, %s252
      %s256 = smul.addr %s250, 8
      %s257 = sadd.s32 %s255, %s256
      %s258 = smul.addr %s257, 4
      %s259 = scalar_lea.vmem %s0, %s258
      %s260 = smul.u32 8, %s20
      %p261 = scmp.lt.s32.totalorder %s19, 1
      %s262 = scalar_select %p261, %s19, 1
      %p263 = scmp.lt.s32.totalorder %s21, 0
      %s264 = scalar_select %p263, %s21, 0
      %s265 = sadd.s32 %s264, %s262
      %s266 = scalar_lea.vmem %s1, %s265
      %p267 = scmp.lt.s32.totalorder %s19, 1
      %s268 = scalar_select %p267, %s19, 1
      %p269 = scmp.lt.s32.totalorder %s21, 0
      %s270 = scalar_select %p269, %s21, 0
      %s271 = sadd.s32 %s270, %s268
      %s272 = scalar_lea.vmem %s2, %s271
      %s273 = smul.u32 8, %s20
      %p274 = scmp.lt.s32.totalorder %s19, 1
      %s275 = scalar_select %p274, %s19, 1
      %p276 = scmp.lt.s32.totalorder %s273, 7
      %s277 = scalar_select %p276, %s273, 7
      %p278 = scmp.lt.s32.totalorder %s21, 0
      %s279 = scalar_select %p278, %s21, 0
      %s280 = sadd.s32 %s279, %s277
      %s281 = smul.addr %s275, 8
      %s282 = sadd.s32 %s280, %s281
      %s283 = smul.addr %s282, 8
      %s284 = scalar_lea.vmem %s3, %s283
      %s285 = smul.u32 8, %s20
      %v286 = vld [vmem:[%s259] sm:$0xf]
      %v287 = vld [vmem:[%s259 + $0x4] sm:$0xf]
      %v288 = vld [vmem:[%s259 + $0x8] sm:$0xf]
      %v289 = vld [vmem:[%s259 + $0xc] sm:$0xf]
      %v290 = vld [vmem:[%s259 + $0x10] sm:$0xf]
      %v291 = vld [vmem:[%s259 + $0x14] sm:$0xf]
      %v292 = vld [vmem:[%s259 + $0x18] sm:$0xf]
      %v293 = vld [vmem:[%s259 + $0x1c] sm:$0xf]
      %v294 = vunpack.c.l.bf16 %v286
      %v295 = vunpack.c.l.bf16 %v287
      %v296 = vunpack.c.l.bf16 %v288
      %v297 = vunpack.c.l.bf16 %v289
      %v298 = vunpack.c.l.bf16 %v290
      %v299 = vunpack.c.l.bf16 %v291
      %v300 = vunpack.c.l.bf16 %v292
      %v301 = vunpack.c.l.bf16 %v293
      %v302 = vld [vmem:[%s266] sm:$0x1]
      %v304 = vlaneseq
      %v305 = vshrl.u32 %v304, 7
      %v306 = vsub.s32 0, %v305
      %v307 = vrot.slane %v302, %v306
      %v309 = vmul.f32 %v294, %v307
      %v310 = vmul.f32 %v295, %v307
      %v311 = vmul.f32 %v296, %v307
      %v312 = vmul.f32 %v297, %v307
      %v313 = vmul.f32 %v298, %v307
      %v314 = vmul.f32 %v299, %v307
      %v315 = vmul.f32 %v300, %v307
      %v316 = vmul.f32 %v301, %v307
      %v317 = vld [vmem:[%s272] sm:$0x1]
      %v319 = vlaneseq
      %v320 = vshrl.u32 %v319, 7
      %v321 = vsub.s32 0, %v320
      %v322 = vrot.slane %v317, %v321
      %v324 = vadd.f32 %v309, %v322
      %v325 = vadd.f32 %v310, %v322
      %v326 = vadd.f32 %v311, %v322
      %v327 = vadd.f32 %v312, %v322
      %v328 = vadd.f32 %v313, %v322
      %v329 = vadd.f32 %v314, %v322
      %v330 = vadd.f32 %v315, %v322
      %v331 = vadd.f32 %v316, %v322
      %vm332 = vcmp.ge.f32.partialorder %v324, 0.0
      %vm333 = vcmp.ge.f32.partialorder %v325, 0.0
      %vm334 = vcmp.ge.f32.partialorder %v326, 0.0
      %vm335 = vcmp.ge.f32.partialorder %v327, 0.0
      %vm336 = vcmp.ge.f32.partialorder %v328, 0.0
      %vm337 = vcmp.ge.f32.partialorder %v329, 0.0
      %vm338 = vcmp.ge.f32.partialorder %v330, 0.0
      %vm339 = vcmp.ge.f32.partialorder %v331, 0.0
      %v340 = vmul.f32 %v324, 0.2
      %v341 = vmul.f32 %v325, 0.2
      %v342 = vmul.f32 %v326, 0.2
      %v343 = vmul.f32 %v327, 0.2
      %v344 = vmul.f32 %v328, 0.2
      %v345 = vmul.f32 %v329, 0.2
      %v346 = vmul.f32 %v330, 0.2
      %v347 = vmul.f32 %v331, 0.2
      %v348 = vsel %vm332, %v324, %v340
      %v349 = vsel %vm333, %v325, %v341
      %v350 = vsel %vm334, %v326, %v342
      %v351 = vsel %vm335, %v327, %v343
      %v352 = vsel %vm336, %v328, %v344
      %v353 = vsel %vm337, %v329, %v345
      %v354 = vsel %vm338, %v330, %v346
      %v355 = vsel %vm339, %v331, %v347
      %356 = vst [vmem:[%s284] sm:$0xff] %v348
      %357 = vst [vmem:[%s284 + $0x8] sm:$0xff] %v349
      %358 = vst [vmem:[%s284 + $0x10] sm:$0xff] %v350
      %359 = vst [vmem:[%s284 + $0x18] sm:$0xff] %v351
      %360 = vst [vmem:[%s284 + $0x20] sm:$0xff] %v352
      %361 = vst [vmem:[%s284 + $0x28] sm:$0xff] %v353
      %362 = vst [vmem:[%s284 + $0x30] sm:$0xff] %v354
      %363 = vst [vmem:[%s284 + $0x38] sm:$0xff] %v355
      %s364 = smul.u32 8, %s20
      %p365 = scmp.lt.s32.totalorder %s19, 1
      %s366 = scalar_select %p365, %s19, 1
      %p367 = scmp.lt.s32.totalorder %s364, 7
      %s368 = scalar_select %p367, %s364, 7
      %p369 = scmp.lt.s32.totalorder %s21, 0
      %s370 = scalar_select %p369, %s21, 0
      %s371 = sadd.s32 %s370, %s368
      %s372 = smul.addr %s366, 8
      %s373 = sadd.s32 %s371, %s372
      %s374 = smul.addr %s373, 8
      %s375 = scalar_lea.vmem %s3, %s374
      // Predicated region
      $region33: #{conv_block_forward.5} parent=31 // pred_check
        %p376 = pneg %p141
      $region34: #{conv_block_forward.5} parent=31 // pred_check_branch
        %378 = sbr.rel (%p376) target = $region36
      $region35: #{conv_block_forward.5} parent=31 // pred_region
        %s379 = smul.u32 8, %s20
      $region36: #{conv_block_forward.5} parent=31 // pred_fallthru
        _
    $region32: #{conv_block_forward.5} parent=5 // pred_fallthru
      _
    %p380 = scmp.le.s32.totalorder 2, %s9
    // Predicated region
    $region37: #{conv_block_forward.5} parent=5 // pred_check
      %p381 = pneg %p380
    $region38: #{conv_block_forward.5} parent=5 // pred_check_branch
      %383 = sbr.rel (%p381) target = $region40
    $region39: #{conv_block_forward.5} parent=5 // pred_region
      %s384 = ssub.s32 %s9, 2
      // Predicated region
      $region41: #{conv_block_forward.5} parent=39 // pred_check
        %p385 = pneg %p147
      $region42: #{conv_block_forward.5} parent=39 // pred_check_branch
        %387 = sbr.rel (%p385) target = $region44
      $region43: #{conv_block_forward.5} parent=39 // pred_region
        %s388 = smul.u32 8, %s23
        %p389 = scmp.lt.s32.totalorder %s22, 1
        %s390 = scalar_select %p389, %s22, 1
        %p391 = scmp.lt.s32.totalorder %s388, 7
        %s392 = scalar_select %p391, %s388, 7
        %p393 = scmp.lt.s32.totalorder %s24, 0
        %s394 = scalar_select %p393, %s24, 0
        %s395 = sadd.s32 %s394, %s392
        %s396 = smul.addr %s390, 8
        %s397 = sadd.s32 %s395, %s396
        %s398 = smul.addr %s397, 8
        %s399 = scalar_lea.vmem %s3, %s398
      $region44: #{conv_block_forward.5} parent=39 // pred_fallthru
        _
    $region40: #{conv_block_forward.5} parent=5 // pred_fallthru
      _
  $region6: #{conv_block_forward.5} parent=0 // loop_footer
    %s13 = sadd.s32 1, %s9
  $region7: #{conv_block_forward.5} parent=0 // loop_footer_branch
    %8 = sbr.rel target = $region3
  $region8: #{conv_block_forward.5} parent=0 // loop_exit
    _

// kernel: conv_block_forward.4
$region0: #{conv_block_forward.4}
  #allocation0 [shape = 'u32[]', space=smem, size = 0x4, offset = 0x4, fixed_abs, tag = 'smem constant byte address 0x4 - core index']
  #allocation1 [shape = 'u32[144,128]{1,0:T(1,128)}', space=vmem, size = 0x12000, scoped, tag = 'internal scratch']
  %s0 = inlined_call_operand.vmem [shape: bf16[2,64,128], index: 0, kind: input, shape index: {}]
  %s1 = inlined_call_operand.vmem [shape: f32[2,1,128], index: 1, kind: output, shape index: {0}]
  %s2 = inlined_call_operand.vmem [shape: f32[2,1,128], index: 2, kind: output, shape index: {1}]
  %3 = xla_tuple %s1, %s2
  %s4 = sld [smem:[#allocation0]]
  $region26: #{conv_block_forward.4} parent=0
    _
  %s6 = ssub.s32 1, %s4
  %s7 = scalar_select 0, %s6, %s4
  // Predicated region
  $region2: #{conv_block_forward.4} parent=0 // pred_check
    _
  $region3: #{conv_block_forward.4} parent=0 // pred_check_branch
    %9 = sbr.rel (0) target = $region5
  $region4: #{conv_block_forward.4} parent=0 // pred_region
    _
  $region5: #{conv_block_forward.4} parent=0 // pred_fallthru
    _
  %p10 = scmp.eq.s32.totalorder 0, 0
  // Predicated region
  $region6: #{conv_block_forward.4} parent=0 // pred_check
    %p11 = pneg %p10
  $region7: #{conv_block_forward.4} parent=0 // pred_check_branch
    %13 = sbr.rel (%p11) target = $region9
  $region8: #{conv_block_forward.4} parent=0 // pred_region
    %14 = vst [vmem:[%s1] sm:$0x1] 0.0
    %15 = vst [vmem:[%s1 + $0x1] sm:$0x1] 0.0
    %16 = vst [vmem:[%s2] sm:$0x1] 0.0
    %17 = vst [vmem:[%s2 + $0x1] sm:$0x1] 0.0
  $region9: #{conv_block_forward.4} parent=0 // pred_fallthru
    _
  %v18 = vld [vmem:[%s0] sm:$0xf]
  %v19 = vld [vmem:[%s0 + $0x4] sm:$0xf]
  %v20 = vld [vmem:[%s0 + $0x8] sm:$0xf]
  %v21 = vld [vmem:[%s0 + $0xc] sm:$0xf]
  %v22 = vld [vmem:[%s0 + $0x10] sm:$0xf]
  %v23 = vld [vmem:[%s0 + $0x14] sm:$0xf]
  %v24 = vld [vmem:[%s0 + $0x18] sm:$0xf]
  %v25 = vld [vmem:[%s0 + $0x1c] sm:$0xf]
  %v26 = vld [vmem:[%s0 + $0x20] sm:$0xf]
  %v27 = vld [vmem:[%s0 + $0x24] sm:$0xf]
  %v28 = vld [vmem:[%s0 + $0x28] sm:$0xf]
  %v29 = vld [vmem:[%s0 + $0x2c] sm:$0xf]
  %v30 = vld [vmem:[%s0 + $0x30] sm:$0xf]
  %v31 = vld [vmem:[%s0 + $0x34] sm:$0xf]
  %v32 = vld [vmem:[%s0 + $0x38] sm:$0xf]
  %v33 = vld [vmem:[%s0 + $0x3c] sm:$0xf]
  %v34 = vunpack.c.l.bf16 %v18
  %v35 = vunpack.c.l.bf16 %v19
  %v36 = vunpack.c.l.bf16 %v20
  %v37 = vunpack.c.l.bf16 %v21
  %v38 = vunpack.c.l.bf16 %v22
  %v39 = vunpack.c.l.bf16 %v23
  %v40 = vunpack.c.l.bf16 %v24
  %v41 = vunpack.c.l.bf16 %v25
  %v42 = vunpack.c.l.bf16 %v26
  %v43 = vunpack.c.l.bf16 %v27
  %v44 = vunpack.c.l.bf16 %v28
  %v45 = vunpack.c.l.bf16 %v29
  %v46 = vunpack.c.l.bf16 %v30
  %v47 = vunpack.c.l.bf16 %v31
  %v48 = vunpack.c.l.bf16 %v32
  %v49 = vunpack.c.l.bf16 %v33
  %v50 = vld [vmem:[%s1] sm:$0x1]
  %v51 = vld [vmem:[%s1 + $0x1] sm:$0x1]
  %v52 = vadd.f32 %v34, %v35
  %v53 = vadd.f32 %v52, %v36
  %v54 = vadd.f32 %v53, %v37
  %v55 = vadd.f32 %v54, %v38
  %v56 = vadd.f32 %v55, %v39
  %v57 = vadd.f32 %v56, %v40
  %v58 = vadd.f32 %v57, %v41
  %v59 = vrot.slane %v58, 4
  %v60 = vadd.f32 %v58, %v59
  %v61 = vrot.slane %v60, 2
  %v62 = vadd.f32 %v60, %v61
  %v63 = vrot.slane %v62, 1
  %v64 = vadd.f32 %v62, %v63
  %v65 = vadd.f32 %v42, %v43
  %v66 = vadd.f32 %v65, %v44
  %v67 = vadd.f32 %v66, %v45
  %v68 = vadd.f32 %v67, %v46
  %v69 = vadd.f32 %v68, %v47
  %v70 = vadd.f32 %v69, %v48
  %v71 = vadd.f32 %v70, %v49
  %v72 = vrot.slane %v71, 4
  %v73 = vadd.f32 %v71, %v72
  %v74 = vrot.slane %v73, 2
  %v75 = vadd.f32 %v73, %v74
  %v76 = vrot.slane %v75, 1
  %v77 = vadd.f32 %v75, %v76
  %v78 = vadd.f32 %v50, %v64
  %v79 = vadd.f32 %v51, %v77
  %80 = vst [vmem:[%s1] sm:$0x1] %v78
  %81 = vst [vmem:[%s1 + $0x1] sm:$0x1] %v79
  %v82 = vld [vmem:[%s2] sm:$0x1]
  %v83 = vld [vmem:[%s2 + $0x1] sm:$0x1]
  %v84 = vmul.f32 %v34, %v34
  %v85 = vmul.f32 %v35, %v35
  %v86 = vmul.f32 %v36, %v36
  %v87 = vmul.f32 %v37, %v37
  %v88 = vmul.f32 %v38, %v38
  %v89 = vmul.f32 %v39, %v39
  %v90 = vmul.f32 %v40, %v40
  %v91 = vmul.f32 %v41, %v41
  %v92 = vmul.f32 %v42, %v42
  %v93 = vmul.f32 %v43, %v43
  %v94 = vmul.f32 %v44, %v44
  %v95 = vmul.f32 %v45, %v45
  %v96 = vmul.f32 %v46, %v46
  %v97 = vmul.f32 %v47, %v47
  %v98 = vmul.f32 %v48, %v48
  %v99 = vmul.f32 %v49, %v49
  %v100 = vadd.f32 %v84, %v85
  %v101 = vadd.f32 %v100, %v86
  %v102 = vadd.f32 %v101, %v87
  %v103 = vadd.f32 %v102, %v88
  %v104 = vadd.f32 %v103, %v89
  %v105 = vadd.f32 %v104, %v90
  %v106 = vadd.f32 %v105, %v91
  %v107 = vrot.slane %v106, 4
  %v108 = vadd.f32 %v106, %v107
  %v109 = vrot.slane %v108, 2
  %v110 = vadd.f32 %v108, %v109
  %v111 = vrot.slane %v110, 1
  %v112 = vadd.f32 %v110, %v111
  %v113 = vadd.f32 %v92, %v93
  %v114 = vadd.f32 %v113, %v94
  %v115 = vadd.f32 %v114, %v95
  %v116 = vadd.f32 %v115, %v96
  %v117 = vadd.f32 %v116, %v97
  %v118 = vadd.f32 %v117, %v98
  %v119 = vadd.f32 %v118, %v99
  %v120 = vrot.slane %v119, 4
  %v121 = vadd.f32 %v119, %v120
  %v122 = vrot.slane %v121, 2
  %v123 = vadd.f32 %v121, %v122
  %v124 = vrot.slane %v123, 1
  %v125 = vadd.f32 %v123, %v124
  %v126 = vadd.f32 %v82, %v112
  %v127 = vadd.f32 %v83, %v125
  %128 = vst [vmem:[%s2] sm:$0x1] %v126
  %129 = vst [vmem:[%s2 + $0x1] sm:$0x1] %v127
  // Predicated region
  $region10: #{conv_block_forward.4} parent=0 // pred_check
    _
  $region11: #{conv_block_forward.4} parent=0 // pred_check_branch
    %131 = sbr.rel (0) target = $region13
  $region12: #{conv_block_forward.4} parent=0 // pred_region
    _
  $region13: #{conv_block_forward.4} parent=0 // pred_fallthru
    _
  // Predicated region
  $region14: #{conv_block_forward.4} parent=0 // pred_check
    _
  $region15: #{conv_block_forward.4} parent=0 // pred_check_branch
    %133 = sbr.rel (0) target = $region17
  $region16: #{conv_block_forward.4} parent=0 // pred_region
    _
  $region17: #{conv_block_forward.4} parent=0 // pred_fallthru
    _
  // Predicated region
  $region18: #{conv_block_forward.4} parent=0 // pred_check
    _
  $region19: #{conv_block_forward.4} parent=0 // pred_check_branch
    %135 = sbr.rel (0) target = $region21
  $region20: #{conv_block_forward.4} parent=0 // pred_region
    _
  $region21: #{conv_block_forward.4} parent=0 // pred_fallthru
    _
  // Predicated region
  $region22: #{conv_block_forward.4} parent=0 // pred_check
    _
  $region23: #{conv_block_forward.4} parent=0 // pred_check_branch
    %137 = sbr.rel (0) target = $region25
  $region24: #{conv_block_forward.4} parent=0 // pred_region
    _
  $region25: #{conv_block_forward.4} parent=0 // pred_fallthru
    _

// kernel: conv_block_forward.3
$region0: #{conv_block_forward.3}
  #allocation0 [shape = 'u32[]', space=smem, size = 0x4, offset = 0x4, fixed_abs, tag = 'smem constant byte address 0x4 - core index']
  #allocation1 [shape = 'u32[144,128]{1,0:T(1,128)}', space=vmem, size = 0x12000, scoped, tag = 'internal scratch']
  #allocation2 [shape = 'f32[64,128]{1,0:T(8,128)}', space=vmem, size = 0x8000, scoped, tag = 'scratch operand']
  %s0 = inlined_call_operand.vmem [shape: bf16[128,128], index: 0, kind: input, shape index: {}]
  %s1 = inlined_call_operand.vmem [shape: bf16[128,128], index: 1, kind: input, shape index: {}]
  %s2 = inlined_call_operand.vmem [shape: f32[1,128], index: 2, kind: input, shape index: {}]
  %s3 = inlined_call_operand.vmem [shape: bf16[128,128], index: 3, kind: output, shape index: {}]
  %s4 = sld [smem:[#allocation0]]
  $region53: #{conv_block_forward.3} parent=0
    _
  %s6 = ssub.s32 1, %s4
  %s7 = scalar_select 0, %s6, %s4
  loop: start=0, step=1, limit=4
  $region2: #{conv_block_forward.3} parent=0 // loop_pre_header
    _
  $region3: #{conv_block_forward.3} parent=0 // loop_header
    %s9 = sphi 0, %s13
    %p10 = scmp.ge.s32.totalorder %s9, 4
    %s16 = sphi 0, %s35
    %s17 = sphi 0, %s31
    %s18 = sphi 0, %s27
    %s19 = sphi 0, %s16
    %s20 = sphi 0, %s17
    %s21 = sphi 0, %s18
    %s22 = sphi 0, %s19
    %s23 = sphi 0, %s20
    %s24 = sphi 0, %s21
    %s40 = sphi 0, %s42
    %s43 = sphi 0, %s40
    %s44 = sphi 0, %s43
    %s60 = sphi 0, %s44
    %s68 = sphi 0, %s70
    %s71 = sphi 0, %s68
    %s72 = sphi 0, %s71
    %s88 = sphi 0, %s72
    %s94 = sphi 0, %s96
    %s97 = sphi 0, %s94
    %s98 = sphi 0, %s97
    %s114 = sphi 0, %s98
    %s122 = sphi 0, %s124
    %s125 = sphi 0, %s122
    %s126 = sphi 0, %s125
    %s142 = sphi 0, %s126
  $region4: #{conv_block_forward.3} parent=0 // loop_header_branch
    %12 = sbr.rel (%p10) target = $region8
  $region5: #{conv_block_forward.3} parent=0 // loop_body
    %s14 = ssub.s32 %s9, 1
    %s15 = ssub.s32 %s9, 2
    %s25 = sadd.s32 1, %s18
    %p26 = scmp.ge.s32.totalorder %s25, 1
    %s27 = scalar_select %p26, 0, %s25
    %s28 = sadd.s32 1, %s17
    %s29 = scalar_select %p26, %s28, %s17
    %p30 = scmp.ge.s32.totalorder %s29, 1
    %s31 = scalar_select %p30, 0, %s29
    %s32 = sadd.s32 1, %s16
    %s33 = scalar_select %p30, %s32, %s16
    %p34 = scmp.ge.s32.totalorder %s33, 2
    %s35 = scalar_select %p34, 0, %s33
    %s36 = ssub.s32 %s16, %s35
    %s37 = ssub.s32 %s18, %s27
    %s38 = sor.u32 %s36, %s37
    %p39 = scmp.eq.s32.totalorder %s38, 0
    %s41 = sadd.s32 %s40, 1
    %s42 = scalar_select %p39, %s40, %s41
    %p45 = pneg %p39
    %p46 = scmp.eq.s32.totalorder %s9, 1
    %p47 = por %p45, %p46
    %p48 = scmp.ne.s32.totalorder %s40, %s43
    %p49 = scmp.eq.s32.totalorder %s9, 0
    %p50 = por %p48, %p49
    %p51 = scmp.ne.s32.totalorder %s40, %s43
    %p52 = scmp.eq.s32.totalorder %s14, 1
    %p53 = por %p51, %p52
    %p54 = scmp.ne.s32.totalorder %s43, %s44
    %p55 = scmp.eq.s32.totalorder %s14, 0
    %p56 = por %p54, %p55
    %p57 = scmp.ne.s32.totalorder %s43, %s44
    %p58 = scmp.eq.s32.totalorder %s15, 1
    %p59 = por %p57, %p58
    %p61 = scmp.ne.s32.totalorder %s44, %s60
    %p62 = scmp.eq.s32.totalorder %s15, 0
    %p63 = por %p61, %p62
    %s64 = ssub.s32 %s18, %s27
    %s65 = ssub.s32 %s17, %s31
    %s66 = sor.u32 %s64, %s65
    %p67 = scmp.eq.s32.totalorder %s66, 0
    %s69 = sadd.s32 %s68, 1
    %s70 = scalar_select %p67, %s68, %s69
    %p73 = pneg %p67
    %p74 = scmp.eq.s32.totalorder %s9, 1
    %p75 = por %p73, %p74
    %p76 = scmp.ne.s32.totalorder %s68, %s71
    %p77 = scmp.eq.s32.totalorder %s9, 0
    %p78 = por %p76, %p77
    %p79 = scmp.ne.s32.totalorder %s68, %s71
    %p80 = scmp.eq.s32.totalorder %s14, 1
    %p81 = por %p79, %p80
    %p82 = scmp.ne.s32.totalorder %s71, %s72
    %p83 = scmp.eq.s32.totalorder %s14, 0
    %p84 = por %p82, %p83
    %p85 = scmp.ne.s32.totalorder %s71, %s72
    %p86 = scmp.eq.s32.totalorder %s15, 1
    %p87 = por %p85, %p86
    %p89 = scmp.ne.s32.totalorder %s72, %s88
    %p90 = scmp.eq.s32.totalorder %s15, 0
    %p91 = por %p89, %p90
    %s92 = ssub.s32 %s17, %s31
    %p93 = scmp.eq.s32.totalorder %s92, 0
    %s95 = sadd.s32 %s94, 1
    %s96 = scalar_select %p93, %s94, %s95
    %p99 = pneg %p93
    %p100 = scmp.eq.s32.totalorder %s9, 1
    %p101 = por %p99, %p100
    %p102 = scmp.ne.s32.totalorder %s94, %s97
    %p103 = scmp.eq.s32.totalorder %s9, 0
    %p104 = por %p102, %p103
    %p105 = scmp.ne.s32.totalorder %s94, %s97
    %p106 = scmp.eq.s32.totalorder %s14, 1
    %p107 = por %p105, %p106
    %p108 = scmp.ne.s32.totalorder %s97, %s98
    %p109 = scmp.eq.s32.totalorder %s14, 0
    %p110 = por %p108, %p109
    %p111 = scmp.ne.s32.totalorder %s97, %s98
    %p112 = scmp.eq.s32.totalorder %s15, 1
    %p113 = por %p111, %p112
    %p115 = scmp.ne.s32.totalorder %s98, %s114
    %p116 = scmp.eq.s32.totalorder %s15, 0
    %p117 = por %p115, %p116
    %s118 = ssub.s32 %s16, %s35
    %s119 = ssub.s32 %s17, %s31
    %s120 = sor.u32 %s118, %s119
    %p121 = scmp.eq.s32.totalorder %s120, 0
    %s123 = sadd.s32 %s122, 1
    %s124 = scalar_select %p121, %s122, %s123
    %p127 = pneg %p121
    %p128 = scmp.eq.s32.totalorder %s9, 1
    %p129 = por %p127, %p128
    %p130 = scmp.ne.s32.totalorder %s122, %s125
    %p131 = scmp.eq.s32.totalorder %s9, 0
    %p132 = por %p130, %p131
    %p133 = scmp.ne.s32.totalorder %s122, %s125
    %p134 = scmp.eq.s32.totalorder %s14, 1
    %p135 = por %p133, %p134
    %p136 = scmp.ne.s32.totalorder %s125, %s126
    %p137 = scmp.eq.s32.totalorder %s14, 0
    %p138 = por %p136, %p137
    %p139 = scmp.ne.s32.totalorder %s125, %s126
    %p140 = scmp.eq.s32.totalorder %s15, 1
    %p141 = por %p139, %p140
    %p143 = scmp.ne.s32.totalorder %s126, %s142
    %p144 = scmp.eq.s32.totalorder %s15, 0
    %p145 = por %p143, %p144
    %p146 = scmp.le.s32.totalorder 1, %s9
    %p147 = scmp.lt.s32.totalorder %s9, 3
    %p148 = pnand %p146, %p147
    %p149 = pneg %p148
    // Predicated region
    $region9: #{conv_block_forward.3} parent=5 // pred_check
      _
    $region10: #{conv_block_forward.3} parent=5 // pred_check_branch
      %151 = sbr.rel (%p148) target = $region12
    $region11: #{conv_block_forward.3} parent=5 // pred_region
      %s152 = ssub.s32 %s9, 1
      // Predicated region
      $region13: #{conv_block_forward.3} parent=11 // pred_check
        %p153 = pneg %p84
      $region14: #{conv_block_forward.3} parent=11 // pred_check_branch
        %155 = sbr.rel (%p153) target = $region16
      $region15: #{conv_block_forward.3} parent=11 // pred_region
        %s156 = smul.u32 16, %s21
        %p157 = scmp.lt.s32.totalorder %s156, 15
        %s158 = scalar_select %p157, %s156, 15
        %p159 = scmp.lt.s32.totalorder %s20, 0
        %s160 = scalar_select %p159, %s20, 0
        %s161 = sadd.s32 %s160, %s158
        %s162 = smul.addr %s161, 4
        %s163 = scalar_lea.vmem %s1, %s162
        %s164 = smul.u32 16, %s21
      $region16: #{conv_block_forward.3} parent=11 // pred_fallthru
        _
      // Predicated region
      $region17: #{conv_block_forward.3} parent=11 // pred_check
        %p165 = pneg %p110
      $region18: #{conv_block_forward.3} parent=11 // pred_check_branch
        %167 = sbr.rel (%p165) target = $region20
      $region19: #{conv_block_forward.3} parent=11 // pred_region
        %p168 = scmp.lt.s32.totalorder %s20, 0
        %s169 = scalar_select %p168, %s20, 0
        %s170 = scalar_lea.vmem %s2, %s169
      $region20: #{conv_block_forward.3} parent=11 // pred_fallthru
        _
    $region12: #{conv_block_forward.3} parent=5 // pred_fallthru
      _
    %p171 = scmp.lt.s32.totalorder %s9, 2
    // Predicated region
    $region21: #{conv_block_forward.3} parent=5 // pred_check
      %p172 = pneg %p171
    $region22: #{conv_block_forward.3} parent=5 // pred_check_branch
      %174 = sbr.rel (%p172) target = $region24
    $region23: #{conv_block_forward.3} parent=5 // pred_region
      // Predicated region
      $region25: #{conv_block_forward.3} parent=23 // pred_check
        %p175 = pneg %p50
      $region26: #{conv_block_forward.3} parent=23 // pred_check_branch
        %177 = sbr.rel (%p175) target = $region28
      $region27: #{conv_block_forward.3} parent=23 // pred_region
        %s178 = smul.u32 8, %s16
        %p179 = scmp.lt.s32.totalorder %s178, 15
        %s180 = scalar_select %p179, %s178, 15
        %p181 = scmp.lt.s32.totalorder %s18, 0
        %s182 = scalar_select %p181, %s18, 0
        %s183 = sadd.s32 %s182, %s180
        %s184 = smul.addr %s183, 4
        %s185 = scalar_lea.vmem %s0, %s184
        %s186 = smul.u32 8, %s16
      $region28: #{conv_block_forward.3} parent=23 // pred_fallthru
        _
    $region24: #{conv_block_forward.3} parent=5 // pred_fallthru
      _
    %p187 = scmp.le.s32.totalorder 1, %s9
    %p188 = scmp.lt.s32.totalorder %s9, 3
    %p189 = pnand %p187, %p188
    %p190 = pneg %p189
    // Predicated region
    $region29: #{conv_block_forward.3} parent=5 // pred_check
      _
    $region30: #{conv_block_forward.3} parent=5 // pred_check_branch
      %192 = sbr.rel (%p189) target = $region32
    $region31: #{conv_block_forward.3} parent=5 // pred_region
      %s193 = ssub.s32 %s9, 1
      %s194 = smul.u32 8, %s19
      %p195 = scmp.lt.s32.totalorder %s194, 15
      %s196 = scalar_select %p195, %s194, 15
      %p197 = scmp.lt.s32.totalorder %s21, 0
      %s198 = scalar_select %p197, %s21, 0
      %s199 = sadd.s32 %s198, %s196
      %s200 = smul.addr %s199, 4
      %s201 = scalar_lea.vmem %s0, %s200
      %p202 = pneg %p56
      %p203 = pneg %p53
      %s204 = smul.u32 16, %s21
      %p205 = scmp.lt.s32.totalorder %s204, 15
      %s206 = scalar_select %p205, %s204, 15
      %p207 = scmp.lt.s32.totalorder %s20, 0
      %s208 = scalar_select %p207, %s20, 0
      %s209 = sadd.s32 %s208, %s206
      %s210 = smul.addr %s209, 4
      %s211 = scalar_lea.vmem %s1, %s210
      %p212 = pneg %p84
      %p213 = pneg %p81
      %p214 = scmp.lt.s32.totalorder %s20, 0
      %s215 = scalar_select %p214, %s20, 0
      %s216 = scalar_lea.vmem %s2, %s215
      %p217 = pneg %p110
      %p218 = pneg %p107
      %p219 = pneg %p138
      %p220 = pneg %p135
      %s221 = smul.u32 8, %s19
      %p222 = scmp.lt.s32.totalorder %s221, 15
      %s223 = scalar_select %p222, %s221, 15
      %p224 = scmp.lt.s32.totalorder %s20, 0
      %s225 = scalar_select %p224, %s20, 0
      %s226 = sadd.s32 %s225, %s223
      %s227 = smul.addr %s226, 4
      %s228 = scalar_lea.vmem %s3, %s227
      %s229 = smul.u32 8, %s19
      %p230 = scmp.lt.s32.totalorder %s229, 15
      %s231 = scalar_select %p230, %s229, 15
      %p232 = scmp.lt.s32.totalorder %s21, 0
      %s233 = scalar_select %p232, %s21, 0
      %s234 = sadd.s32 %s233, %s231
      %s235 = smul.addr %s234, 4
      %s236 = scalar_lea.vmem %s0, %s235
      %s237 = smul.u32 8, %s19
      %s238 = smul.u32 16, %s21
      %p239 = scmp.lt.s32.totalorder %s238, 15
      %s240 = scalar_select %p239, %s238, 15
      %p241 = scmp.lt.s32.totalorder %s20, 0
      %s242 = scalar_select %p241, %s20, 0
      %s243 = sadd.s32 %s242, %s240
      %s244 = smul.addr %s243, 4
      %s245 = scalar_lea.vmem %s1, %s244
      %s246 = smul.u32 16, %s21
      %p247 = scmp.lt.s32.totalorder %s20, 0
      %s248 = scalar_select %p247, %s20, 0
      %s249 = scalar_lea.vmem %s2, %s248
      %s250 = smul.u32 8, %s19
      %p251 = scmp.lt.s32.totalorder %s250, 15
      %s252 = scalar_select %p251, %s250, 15
      %p253 = scmp.lt.s32.totalorder %s20, 0
      %s254 = scalar_select %p253, %s20, 0
      %s255 = sadd.s32 %s254, %s252
      %s256 = smul.addr %s255, 4
      %s257 = scalar_lea.vmem %s3, %s256
      %s258 = smul.u32 8, %s19
      %p260 = scmp.eq.s32.totalorder %s21, 0
      // Predicated region
      $region33: #{conv_block_forward.3} parent=31 // pred_check
        %p261 = pneg %p260
      $region34: #{conv_block_forward.3} parent=31 // pred_check_branch
        %263 = sbr.rel (%p261) target = $region36
      $region35: #{conv_block_forward.3} parent=31 // pred_region
        %264 = vst [vmem:[#allocation2] sm:$0xff] 0.0
        %265 = vst [vmem:[#allocation2 + $0x8] sm:$0xff] 0.0
        %266 = vst [vmem:[#allocation2 + $0x10] sm:$0xff] 0.0
        %267 = vst [vmem:[#allocation2 + $0x18] sm:$0xff] 0.0
        %268 = vst [vmem:[#allocation2 + $0x20] sm:$0xff] 0.0
        %269 = vst [vmem:[#allocation2 + $0x28] sm:$0xff] 0.0
        %270 = vst [vmem:[#allocation2 + $0x30] sm:$0xff] 0.0
        %271 = vst [vmem:[#allocation2 + $0x38] sm:$0xff] 0.0
      $region36: #{conv_block_forward.3} parent=31 // pred_fallthru
        _
      %v272 = vld [vmem:[#allocation2] sm:$0xff]
      %v273 = vld [vmem:[#allocation2 + $0x8] sm:$0xff]
      %v274 = vld [vmem:[#allocation2 + $0x10] sm:$0xff]
      %v275 = vld [vmem:[#allocation2 + $0x18] sm:$0xff]
      %v276 = vld [vmem:[#allocation2 + $0x20] sm:$0xff]
      %v277 = vld [vmem:[#allocation2 + $0x28] sm:$0xff]
      %v278 = vld [vmem:[#allocation2 + $0x30] sm:$0xff]
      %v279 = vld [vmem:[#allocation2 + $0x38] sm:$0xff]
      %v280 = vld [vmem:[%s236] sm:$0xf]
      %v281 = vld [vmem:[%s236 + $0x4] sm:$0xf]
      %v282 = vld [vmem:[%s236 + $0x8] sm:$0xf]
      %v283 = vld [vmem:[%s236 + $0xc] sm:$0xf]
      %v284 = vld [vmem:[%s236 + $0x10] sm:$0xf]
      %v285 = vld [vmem:[%s236 + $0x14] sm:$0xf]
      %v286 = vld [vmem:[%s236 + $0x18] sm:$0xf]
      %v287 = vld [vmem:[%s236 + $0x1c] sm:$0xf]
      %v288 = vld [vmem:[%s245] sm:$0xf]
      %v289 = vld [vmem:[%s245 + $0x4] sm:$0xf]
      %v290 = vld [vmem:[%s245 + $0x8] sm:$0xf]
      %v291 = vld [vmem:[%s245 + $0xc] sm:$0xf]
      %v292 = vld [vmem:[%s245 + $0x10] sm:$0xf]
      %v293 = vld [vmem:[%s245 + $0x14] sm:$0xf]
      %v294 = vld [vmem:[%s245 + $0x18] sm:$0xf]
      %v295 = vld [vmem:[%s245 + $0x1c] sm:$0xf]
      %v296 = vld [vmem:[%s245 + $0x20] sm:$0xf]
      %v297 = vld [vmem:[%s245 + $0x24] sm:$0xf]
      %v298 = vld [vmem:[%s245 + $0x28] sm:$0xf]
      %v299 = vld [vmem:[%s245 + $0x2c] sm:$0xf]
      %v300 = vld [vmem:[%s245 + $0x30] sm:$0xf]
      %v301 = vld [vmem:[%s245 + $0x34] sm:$0xf]
      %v302 = vld [vmem:[%s245 + $0x38] sm:$0xf]
      %v303 = vld [vmem:[%s245 + $0x3c] sm:$0xf]
      %v312 = vunpack.c.l.b16 %v280
      %v313 = vunpack.c.l.b16 %v281
      %v314 = vunpack.c.l.b16 %v282
      %v315 = vunpack.c.l.b16 %v283
      %v316 = vunpack.c.l.b16 %v284
      %v317 = vunpack.c.l.b16 %v285
      %v318 = vunpack.c.l.b16 %v286
      %v319 = vunpack.c.l.b16 %v287
      %v320 = vpack.c.b16 %v313, %v312
      %v321 = vpack.c.b16 %v315, %v314
      %v322 = vpack.c.b16 %v317, %v316
      %v323 = vpack.c.b16 %v319, %v318
      %v344 = vunpack.c.l.b16 %v288
      %v345 = vunpack.c.l.b16 %v289
      %v346 = vunpack.c.l.b16 %v290
      %v347 = vunpack.c.l.b16 %v291
      %v348 = vunpack.c.l.b16 %v292
      %v349 = vunpack.c.l.b16 %v293
      %v350 = vunpack.c.l.b16 %v294
      %v351 = vunpack.c.l.b16 %v295
      %v352 = vunpack.c.l.b16 %v296
      %v353 = vunpack.c.l.b16 %v297
      %v354 = vunpack.c.l.b16 %v298
      %v355 = vunpack.c.l.b16 %v299
      %v356 = vunpack.c.l.b16 %v300
      %v357 = vunpack.c.l.b16 %v301
      %v358 = vunpack.c.l.b16 %v302
      %v359 = vunpack.c.l.b16 %v303
      %v360 = vpack.c.b16 %v345, %v344
      %v361 = vpack.c.b16 %v347, %v346
      %v362 = vpack.c.b16 %v349, %v348
      %v363 = vpack.c.b16 %v351, %v350
      %v364 = vpack.c.b16 %v353, %v352
      %v365 = vpack.c.b16 %v355, %v354
      %v366 = vpack.c.b16 %v357, %v356
      %v367 = vpack.c.b16 %v359, %v358
      %376 = vmatprep.subr.bf16.mxu0 0
      %377 = vmatpush1.bf16.msra.mxu0 %v367
      %378 = vmatprep.subr.bf16.mxu0 0
      %379 = vmatpush1.bf16.msra.mxu0 %v366
      %380 = vmatprep.subr.bf16.mxu0 0
      %381 = vmatpush1.bf16.msra.mxu0 %v365
      %382 = vmatprep.subr.bf16.mxu0 0
      %383 = vmatpush1.bf16.msra.mxu0 %v364
      %384 = vmatprep.subr.bf16.mxu0 0
      %385 = vmatpush1.bf16.msra.mxu0 %v363
      %386 = vmatprep.subr.bf16.mxu0 0
      %387 = vmatpush1.bf16.msra.mxu0 %v362
      %388 = vmatprep.subr.bf16.mxu0 0
      %389 = vmatpush1.bf16.msra.mxu0 %v361
      %390 = vmatprep.subr.bf16.mxu0 0
      %391 = vmatpush1.bf16.msra.mxu0 %v360
      %392 = vmatprep.subr.bf16.mxu0 0
      %393 = vmatpush2.bf16.msra.mxu0 0
      %394 = vmatprep.subr.bf16.mxu0 0
      %395 = vmatpush2.bf16.msra.mxu0 0
      %396 = vmatprep.subr.bf16.mxu0 0
      %397 = vmatpush2.bf16.msra.mxu0 0
      %398 = vmatprep.subr.bf16.mxu0 0
      %399 = vmatpush2.bf16.msra.mxu0 0
      %400 = vmatprep.subr.bf16.mxu0 0
      %401 = vmatpush2.bf16.msra.mxu0 0
      %402 = vmatprep.subr.bf16.mxu0 0
      %403 = vmatpush2.bf16.msra.mxu0 0
      %404 = vmatprep.subr.bf16.mxu0 0
      %405 = vmatpush2.bf16.msra.mxu0 0
      %406 = vmatprep.subr.bf16.mxu0 0
      %407 = vmatpush2.bf16.msra.mxu0 0
      %408 = vmatprep.mubr.bf16.mxu0 0
      %409 = vmatmul.mubr.bf16.gmra.mxu0 %v320
      %v410 = vpop.f32.mrf.mxu0
      %v411 = vadd.f32 0.0, %v410
      %v412 = vpop.f32.mrf.mxu0
      %v413 = vpop.f32.mrf.mxu0
      %v414 = vadd.f32 0.0, %v413
      %v415 = vpop.f32.mrf.mxu0
      %416 = vmatprep.mubr.bf16.mxu0 0
      %417 = vmatmul.mubr.bf16.gmra.mxu0 %v321
      %v418 = vpop.f32.mrf.mxu0
      %v419 = vadd.f32 0.0, %v418
      %v420 = vpop.f32.mrf.mxu0
      %v421 = vpop.f32.mrf.mxu0
      %v422 = vadd.f32 0.0, %v421
      %v423 = vpop.f32.mrf.mxu0
      %424 = vmatprep.mubr.bf16.mxu0 0
      %425 = vmatmul.mubr.bf16.gmra.mxu0 %v322
      %v426 = vpop.f32.mrf.mxu0
      %v427 = vadd.f32 0.0, %v426
      %v428 = vpop.f32.mrf.mxu0
      %v429 = vpop.f32.mrf.mxu0
      %v430 = vadd.f32 0.0, %v429
      %v431 = vpop.f32.mrf.mxu0
      %432 = vmatprep.mubr.bf16.mxu0 0
      %433 = vmatmul.mubr.bf16.gmra.mxu0 %v323
      %v434 = vpop.f32.mrf.mxu0
      %v435 = vadd.f32 0.0, %v434
      %v436 = vpop.f32.mrf.mxu0
      %v437 = vpop.f32.mrf.mxu0
      %v438 = vadd.f32 0.0, %v437
      %v439 = vpop.f32.mrf.mxu0
      %440 = vdwg.mxu0
      %v441 = vadd.f32 %v272, %v411
      %v442 = vadd.f32 %v273, %v414
      %v443 = vadd.f32 %v274, %v419
      %v444 = vadd.f32 %v275, %v422
      %v445 = vadd.f32 %v276, %v427
      %v446 = vadd.f32 %v277, %v430
      %v447 = vadd.f32 %v278, %v435
      %v448 = vadd.f32 %v279, %v438
      %449 = vst [vmem:[#allocation2] sm:$0xff] %v441
      %450 = vst [vmem:[#allocation2 + $0x8] sm:$0xff] %v442
      %451 = vst [vmem:[#allocation2 + $0x10] sm:$0xff] %v443
      %452 = vst [vmem:[#allocation2 + $0x18] sm:$0xff] %v444
      %453 = vst [vmem:[#allocation2 + $0x20] sm:$0xff] %v445
      %454 = vst [vmem:[#allocation2 + $0x28] sm:$0xff] %v446
      %455 = vst [vmem:[#allocation2 + $0x30] sm:$0xff] %v447
      %456 = vst [vmem:[#allocation2 + $0x38] sm:$0xff] %v448
      // Predicated region
      $region37: #{conv_block_forward.3} parent=31 // pred_check
        %p457 = pneg %p260
      $region38: #{conv_block_forward.3} parent=31 // pred_check_branch
        %459 = sbr.rel (%p457) target = $region40
      $region39: #{conv_block_forward.3} parent=31 // pred_region
        %v460 = vld [vmem:[#allocation2] sm:$0xff]
        %v461 = vld [vmem:[#allocation2 + $0x8] sm:$0xff]
        %v462 = vld [vmem:[#allocation2 + $0x10] sm:$0xff]
        %v463 = vld [vmem:[#allocation2 + $0x18] sm:$0xff]
        %v464 = vld [vmem:[#allocation2 + $0x20] sm:$0xff]
        %v465 = vld [vmem:[#allocation2 + $0x28] sm:$0xff]
        %v466 = vld [vmem:[#allocation2 + $0x30] sm:$0xff]
        %v467 = vld [vmem:[#allocation2 + $0x38] sm:$0xff]
        %v468 = vld [vmem:[%s249] sm:$0x1]
        %v470 = vlaneseq
        %v471 = vshrl.u32 %v470, 7
        %v472 = vsub.s32 0, %v471
        %v473 = vrot.slane %v468, %v472
        %v475 = vadd.f32 %v460, %v473
        %v476 = vadd.f32 %v461, %v473
        %v477 = vadd.f32 %v462, %v473
        %v478 = vadd.f32 %v463, %v473
        %v479 = vadd.f32 %v464, %v473
        %v480 = vadd.f32 %v465, %v473
        %v481 = vadd.f32 %v466, %v473
        %v482 = vadd.f32 %v467, %v473
        %v483 = vpack.c.bf16 %v476, %v475
        %v484 = vpack.c.bf16 %v478, %v477
        %v485 = vpack.c.bf16 %v480, %v479
        %v486 = vpack.c.bf16 %v482, %v481
        %v491 = vunpack.c.l.b16 %v483
        %v492 = vunpack.c.h.b16 %v483
        %v493 = vunpack.c.l.b16 %v484
        %v494 = vunpack.c.h.b16 %v484
        %v495 = vunpack.c.l.b16 %v485
        %v496 = vunpack.c.h.b16 %v485
        %v497 = vunpack.c.l.b16 %v486
        %v498 = vunpack.c.h.b16 %v486
        %v499 = vpack.c.b16 %v491, %v491
        %v500 = vpack.c.b16 %v492, %v492
        %v501 = vpack.c.b16 %v493, %v493
        %v502 = vpack.c.b16 %v494, %v494
        %v503 = vpack.c.b16 %v495, %v495
        %v504 = vpack.c.b16 %v496, %v496
        %v505 = vpack.c.b16 %v497, %v497
        %v506 = vpack.c.b16 %v498, %v498
        %515 = vst [vmem:[%s257] sm:$0xf] %v499
        %516 = vst [vmem:[%s257 + $0x4] sm:$0xf] %v500
        %517 = vst [vmem:[%s257 + $0x8] sm:$0xf] %v501
        %518 = vst [vmem:[%s257 + $0xc] sm:$0xf] %v502
        %519 = vst [vmem:[%s257 + $0x10] sm:$0xf] %v503
        %520 = vst [vmem:[%s257 + $0x14] sm:$0xf] %v504
        %521 = vst [vmem:[%s257 + $0x18] sm:$0xf] %v505
        %522 = vst [vmem:[%s257 + $0x1c] sm:$0xf] %v506
      $region40: #{conv_block_forward.3} parent=31 // pred_fallthru
        _
      %s523 = smul.u32 8, %s19
      %p524 = scmp.lt.s32.totalorder %s523, 15
      %s525 = scalar_select %p524, %s523, 15
      %p526 = scmp.lt.s32.totalorder %s20, 0
      %s527 = scalar_select %p526, %s20, 0
      %s528 = sadd.s32 %s527, %s525
      %s529 = smul.addr %s528, 4
      %s530 = scalar_lea.vmem %s3, %s529
      // Predicated region
      $region41: #{conv_block_forward.3} parent=31 // pred_check
        %p531 = pneg %p135
      $region42: #{conv_block_forward.3} parent=31 // pred_check_branch
        %533 = sbr.rel (%p531) target = $region44
      $region43: #{conv_block_forward.3} parent=31 // pred_region
        %s534 = smul.u32 8, %s19
      $region44: #{conv_block_forward.3} parent=31 // pred_fallthru
        _
    $region32: #{conv_block_forward.3} parent=5 // pred_fallthru
      _
    %p535 = scmp.le.s32.totalorder 2, %s9
    // Predicated region
    $region45: #{conv_block_forward.3} parent=5 // pred_check
      %p536 = pneg %p535
    $region46: #{conv_block_forward.3} parent=5 // pred_check_branch
      %538 = sbr.rel (%p536) target = $region48
    $region47: #{conv_block_forward.3} parent=5 // pred_region
      %s539 = ssub.s32 %s9, 2
      // Predicated region
      $region49: #{conv_block_forward.3} parent=47 // pred_check
        %p540 = pneg %p141
      $region50: #{conv_block_forward.3} parent=47 // pred_check_branch
        %542 = sbr.rel (%p540) target = $region52
      $region51: #{conv_block_forward.3} parent=47 // pred_region
        %s543 = smul.u32 8, %s22
        %p544 = scmp.lt.s32.totalorder %s543, 15
        %s545 = scalar_select %p544, %s543, 15
        %p546 = scmp.lt.s32.totalorder %s23, 0
        %s547 = scalar_select %p546, %s23, 0
        %s548 = sadd.s32 %s547, %s545
        %s549 = smul.addr %s548, 4
        %s550 = scalar_lea.vmem %s3, %s549
      $region52: #{conv_block_forward.3} parent=47 // pred_fallthru
        _
    $region48: #{conv_block_forward.3} parent=5 // pred_fallthru
      _
  $region6: #{conv_block_forward.3} parent=0 // loop_footer
    %s13 = sadd.s32 1, %s9
  $region7: #{conv_block_forward.3} parent=0 // loop_footer_branch
    %8 = sbr.rel target = $region3
  $region8: #{conv_block_forward.3} parent=0 // loop_exit
    _

</llo_original>
